<compile_context>
chip_gen: v5e
topology: v5e:2x2
jax: 0.10.0
libtpu: 0.0.40
codegen_flags: <defaults>
</compile_context>

<pallas_src>
import functools

import jax
import jax.numpy as jnp
from jax import lax
from jax.experimental import pallas as pl
from jax.experimental.pallas import tpu as pltpu


def _round_up(n: int, m: int) -> int:
    return ((n + m - 1) // m) * m


def make_mlp_kernel(output_size: int, padded_output_size: int):
    """Builds the fused kernel; output_size is the *real* (unpadded) softmax width."""

    def mlp_kernel(x_ref, w1_ref, b1_ref, w2_ref, b2_ref, o_ref):
        # fc1 (bf16 MXU, f32 accumulation) + bias + ReLU in f32
        x = x_ref[...]                                              # bf16 (TB, in_p)
        h = jnp.dot(x, w1_ref[...], preferred_element_type=jnp.float32)
        h = jnp.maximum(h + b1_ref[...], 0.0)                       # f32 (TB, hid_p)

        # fc2 (bf16 MXU, f32 accumulation) + bias
        z = jnp.dot(h.astype(jnp.bfloat16), w2_ref[...],
                    preferred_element_type=jnp.float32) + b2_ref[...]

        # Softmax over the feature axis, masking padded output lanes.
        if padded_output_size != output_size:
            lane = lax.broadcasted_iota(jnp.int32, z.shape, 1)
            z = jnp.where(lane < output_size, z, jnp.float32(-1e30))
        z = z - jnp.max(z, axis=-1, keepdims=True)
        e = jnp.exp(z)                                              # padded lanes -> ~0
        denom = jnp.sum(e, axis=-1, keepdims=True)
        # approx reciprocal goes to the otherwise-idle EUP slot.
        o_ref[...] = (e * pl.reciprocal(denom, approx=True)).astype(o_ref.dtype)

    return mlp_kernel


@functools.partial(jax.jit, static_argnames=("batch_tile",))
def mlp_forward(x, w1, b1, w2, b2, *, batch_tile=None):
    """x: [B, in], w1: [in, hid], b1: [1, hid], w2: [hid, out], b2: [1, out] (f32).

    Returns softmax(relu(x @ w1 + b1) @ w2 + b2), shape [B, out], f32.
    """
    B, in_size = x.shape
    hid_size = w1.shape[1]
    out_size = w2.shape[1]

    # TPU-native padded dims: lanes -> multiples of 128, batch tile -> multiple of 8.
    in_p = _round_up(in_size, 128)
    hid_p = _round_up(hid_size, 128)
    out_p = _round_up(out_size, 128)

    if batch_tile is None:
        batch_tile = min(512, _round_up(B, 8))
    tb = _round_up(batch_tile, 8)
    b_p = _round_up(B, tb)
    grid = (b_p // tb,)

    # Zero-pad operands; weights/activations in bf16 for the MXU, biases stay f32.
    xp = jnp.zeros((b_p, in_p), jnp.bfloat16).at[:B, :in_size].set(x.astype(jnp.bfloat16))
    w1p = jnp.zeros((in_p, hid_p), jnp.bfloat16).at[:in_size, :hid_size].set(
        w1.astype(jnp.bfloat16))
    b1p = jnp.zeros((1, hid_p), jnp.float32).at[:, :hid_size].set(b1.astype(jnp.float32))
    w2p = jnp.zeros((hid_p, out_p), jnp.bfloat16).at[:hid_size, :out_size].set(
        w2.astype(jnp.bfloat16))
    b2p = jnp.zeros((1, out_p), jnp.float32).at[:, :out_size].set(b2.astype(jnp.float32))

    # Advisory cost estimate for the XLA scheduler.
    flops = 2 * b_p * (in_p * hid_p + hid_p * out_p)
    bytes_accessed = (xp.size * 2 + w1p.size * 2 + w2p.size * 2
                      + b1p.size * 4 + b2p.size * 4 + b_p * out_p * 4)
    cost = pl.CostEstimate(flops=flops, transcendentals=b_p * out_p,
                           bytes_accessed=bytes_accessed)

    # VMEM budget: double-buffered x/out tiles + resident weights/biases + f32 intermediates,
    # with 2x headroom, clamped to stay safely inside v7x's 64 MiB physical VMEM.
    vmem_need = (2 * (tb * in_p * 2 + tb * out_p * 4)
                 + w1p.size * 2 + w2p.size * 2 + b1p.size * 4 + b2p.size * 4
                 + tb * hid_p * 4 + tb * out_p * 4)
    vmem_limit = min(max(2 * vmem_need, 16 << 20), 48 << 20)

    out_padded = pl.pallas_call(
        make_mlp_kernel(out_size, out_p),
        out_shape=jax.ShapeDtypeStruct((b_p, out_p), jnp.float32),
        grid=grid,
        in_specs=[
            pl.BlockSpec((tb, in_p), lambda i: (i, 0)),       # streamed activations
            pl.BlockSpec((in_p, hid_p), lambda i: (0, 0)),    # resident weights
            pl.BlockSpec((1, hid_p), lambda i: (0, 0)),
            pl.BlockSpec((hid_p, out_p), lambda i: (0, 0)),
            pl.BlockSpec((1, out_p), lambda i: (0, 0)),
        ],
        out_specs=pl.BlockSpec((tb, out_p), lambda i: (i, 0)),
        compiler_params=pltpu.CompilerParams(
            dimension_semantics=("parallel",),   # megacore sharding on v7x; harmless elsewhere
            vmem_limit_bytes=int(vmem_limit),
        ),
        cost_estimate=cost,
    )(xp, w1p, b1p, w2p, b2p)

    return out_padded[:B, :out_size]


def init_params(key, input_size, hidden_size, output_size, dtype=jnp.float32):
    """Deterministic init mirroring nn.Linear shapes (weights stored transposed)."""
    k1, k2, k3, k4 = jax.random.split(key, 4)
    s1 = 1.0 / jnp.sqrt(input_size)
    s2 = 1.0 / jnp.sqrt(hidden_size)
    w1 = jax.random.uniform(k1, (input_size, hidden_size), dtype, -s1, s1)
    b1 = jax.random.uniform(k2, (1, hidden_size), dtype, -s1, s1)
    w2 = jax.random.uniform(k3, (hidden_size, output_size), dtype, -s2, s2)
    b2 = jax.random.uniform(k4, (1, output_size), dtype, -s2, s2)
    return w1, b1, w2, b2


if __name__ == "__main__":
    input_size, hidden_size, output_size = 32, 64, 16
    batch = 8

    key = jax.random.PRNGKey(0)
    kx, kp = jax.random.split(key)
    x = jax.random.normal(kx, (batch, input_size), dtype=jnp.float32)
    w1, b1, w2, b2 = init_params(kp, input_size, hidden_size, output_size)

    out = mlp_forward(x, w1, b1, w2, b2)
    jax.block_until_ready(out)

    # Reference check in plain JAX (f32). Tolerance loosened for bf16 matmuls +
    # approx reciprocal, per perf-review guidance.
    h_ref = jnp.maximum(x @ w1 + b1, 0.0)
    z_ref = h_ref @ w2 + b2
    ref = jax.nn.softmax(z_ref, axis=1)

    assert out.shape == (batch, output_size)
    assert jnp.allclose(jnp.sum(out, axis=1), 1.0, atol=1e-2)
    assert jnp.allclose(out, ref, atol=3e-2, rtol=3e-2)

    print("KERNEL_OK")
</pallas_src>

<mosaic_0001>
module attributes {stable_mosaic.version = 11 : i64} {
  func.func @mlp_kernel(%arg0: i32, %arg1: memref<8x128xbf16, #tpu.memory_space<vmem>>, %arg2: memref<128x128xbf16, #tpu.memory_space<vmem>>, %arg3: memref<1x128xf32, #tpu.memory_space<vmem>>, %arg4: memref<128x128xbf16, #tpu.memory_space<vmem>>, %arg5: memref<1x128xf32, #tpu.memory_space<vmem>>, %arg6: memref<8x128xf32, #tpu.memory_space<vmem>>) attributes {dimension_semantics = [#tpu.dimension_semantics<parallel>], iteration_bounds = array<i64: 1>, scalar_prefetch = 0 : i64, scratch_operands = 0 : i64, tpu.core_type = #tpu.core_type<tc>, window_params = [{transform_indices = @transform_0, window_bounds = array<i64: 8, 128>}, {pipeline_mode = #tpu.pipeline_mode<synchronous>, transform_indices = @transform_1, window_bounds = array<i64: 128, 128>}, {pipeline_mode = #tpu.pipeline_mode<synchronous>, transform_indices = @transform_2, window_bounds = array<i64: 1, 128>}, {pipeline_mode = #tpu.pipeline_mode<synchronous>, transform_indices = @transform_3, window_bounds = array<i64: 128, 128>}, {pipeline_mode = #tpu.pipeline_mode<synchronous>, transform_indices = @transform_4, window_bounds = array<i64: 1, 128>}, {transform_indices = @transform_5, window_bounds = array<i64: 8, 128>}]} {
    %c0 = arith.constant 0 : index
    %c0_0 = arith.constant 0 : index
    %0 = vector.load %arg1[%c0, %c0_0] : memref<8x128xbf16, #tpu.memory_space<vmem>>, vector<8x128xbf16>
    %c0_1 = arith.constant 0 : index
    %c0_2 = arith.constant 0 : index
    %1 = vector.load %arg2[%c0_1, %c0_2] : memref<128x128xbf16, #tpu.memory_space<vmem>>, vector<128x128xbf16>
    %cst = arith.constant dense<0.000000e+00> : vector<8x128xf32>
    %2 = tpu.matmul %0, %1, %cst {dimension_numbers = #tpu.dot_dimension_numbers<[1], [0], [0], [1], [0, 0, 1, 1], [], []>} : vector<8x128xbf16>, vector<128x128xbf16>, vector<8x128xf32> -> vector<8x128xf32>
    %c0_3 = arith.constant 0 : index
    %c0_4 = arith.constant 0 : index
    %3 = vector.load %arg3[%c0_3, %c0_4] : memref<1x128xf32, #tpu.memory_space<vmem>>, vector<1x128xf32>
    %4 = vector.broadcast %3 : vector<1x128xf32> to vector<8x128xf32>
    %5 = arith.addf %2, %4 : vector<8x128xf32>
    %cst_5 = arith.constant 0.000000e+00 : f32
    %6 = vector.broadcast %cst_5 : f32 to vector<8x128xf32>
    %7 = arith.maximumf %5, %6 : vector<8x128xf32>
    %8 = arith.truncf %7 : vector<8x128xf32> to vector<8x128xbf16>
    %c0_6 = arith.constant 0 : index
    %c0_7 = arith.constant 0 : index
    %9 = vector.load %arg4[%c0_6, %c0_7] : memref<128x128xbf16, #tpu.memory_space<vmem>>, vector<128x128xbf16>
    %cst_8 = arith.constant dense<0.000000e+00> : vector<8x128xf32>
    %10 = tpu.matmul %8, %9, %cst_8 {dimension_numbers = #tpu.dot_dimension_numbers<[1], [0], [0], [1], [0, 0, 1, 1], [], []>} : vector<8x128xbf16>, vector<128x128xbf16>, vector<8x128xf32> -> vector<8x128xf32>
    %c0_9 = arith.constant 0 : index
    %c0_10 = arith.constant 0 : index
    %11 = vector.load %arg5[%c0_9, %c0_10] : memref<1x128xf32, #tpu.memory_space<vmem>>, vector<1x128xf32>
    %12 = vector.broadcast %11 : vector<1x128xf32> to vector<8x128xf32>
    %13 = arith.addf %10, %12 : vector<8x128xf32>
    %14 = tpu.iota {dimensions = array<i32: 1>} : vector<8x128xi32>
    %c16_i32 = arith.constant 16 : i32
    %15 = vector.broadcast %c16_i32 : i32 to vector<8x128xi32>
    %16 = arith.cmpi slt, %14, %15 : vector<8x128xi32>
    %cst_11 = arith.constant -1.000000e+30 : f32
    %17 = vector.broadcast %cst_11 : f32 to vector<8x128xf32>
    %18 = arith.select %16, %13, %17 : vector<8x128xi1>, vector<8x128xf32>
    %cst_12 = arith.constant dense<0xFF800000> : vector<8xf32>
    %19 = vector.multi_reduction <maximumf>, %18, %cst_12 [1] : vector<8x128xf32> to vector<8xf32>
    %20 = vector.shape_cast %19 : vector<8xf32> to vector<8x1xf32>
    %21 = vector.broadcast %20 : vector<8x1xf32> to vector<8x128xf32>
    %22 = arith.subf %18, %21 : vector<8x128xf32>
    %23 = math.exp %22 : vector<8x128xf32>
    %cst_13 = arith.constant dense<0.000000e+00> : vector<8xf32>
    %24 = vector.multi_reduction <add>, %23, %cst_13 [1] : vector<8x128xf32> to vector<8xf32>
    %25 = vector.shape_cast %24 : vector<8xf32> to vector<8x1xf32>
    %26 = tpu.reciprocal %25 {approx = true} : vector<8x1xf32> -> vector<8x1xf32>
    %27 = vector.broadcast %26 : vector<8x1xf32> to vector<8x128xf32>
    %28 = arith.mulf %23, %27 : vector<8x128xf32>
    %c0_14 = arith.constant 0 : index
    %c0_15 = arith.constant 0 : index
    %29 = vector.load %arg6[%c0_14, %c0_15] : memref<8x128xf32, #tpu.memory_space<vmem>>, vector<8x128xf32>
    tpu.vector_store %arg6[%c0_14, %c0_15], %28 {strides = array<i32>} : memref<8x128xf32, #tpu.memory_space<vmem>>, vector<8x128xf32>,
    return
  }
  func.func @transform_0(%arg0: i32) -> (i32, i32) {
    %c0_i32 = arith.constant 0 : i32
    %c0_i32_0 = arith.constant 0 : i32
    return %arg0, %c0_i32 : i32, i32
  }
  func.func @transform_1(%arg0: i32) -> (i32, i32) {
    %c0_i32 = arith.constant 0 : i32
    %c0_i32_0 = arith.constant 0 : i32
    %c0_i32_1 = arith.constant 0 : i32
    return %c0_i32, %c0_i32_0 : i32, i32
  }
  func.func @transform_2(%arg0: i32) -> (i32, i32) {
    %c0_i32 = arith.constant 0 : i32
    %c0_i32_0 = arith.constant 0 : i32
    %c0_i32_1 = arith.constant 0 : i32
    return %c0_i32, %c0_i32_0 : i32, i32
  }
  func.func @transform_3(%arg0: i32) -> (i32, i32) {
    %c0_i32 = arith.constant 0 : i32
    %c0_i32_0 = arith.constant 0 : i32
    %c0_i32_1 = arith.constant 0 : i32
    return %c0_i32, %c0_i32_0 : i32, i32
  }
  func.func @transform_4(%arg0: i32) -> (i32, i32) {
    %c0_i32 = arith.constant 0 : i32
    %c0_i32_0 = arith.constant 0 : i32
    %c0_i32_1 = arith.constant 0 : i32
    return %c0_i32, %c0_i32_0 : i32, i32
  }
  func.func @transform_5(%arg0: i32) -> (i32, i32) {
    %c0_i32 = arith.constant 0 : i32
    %c0_i32_0 = arith.constant 0 : i32
    return %arg0, %c0_i32 : i32, i32
  }
}

</mosaic_0001>

<llo_original>
// kernel: mlp_forward.1
$region0: #{mlp_forward.1}
  #allocation0 [shape = 'u32[]', space=smem, size = 0x4, offset = 0x4, fixed_abs, tag = 'smem constant byte address 0x4 - core index']
  #allocation1 [shape = 'u32[72,128]{1,0:T(1,128)}', space=vmem, size = 0x9000, scoped, tag = 'internal scratch']
  %s0 = inlined_call_operand.vmem [shape: bf16[8,128], index: 0, kind: input, shape index: {}]
  %s1 = inlined_call_operand.vmem [shape: bf16[128,128], index: 1, kind: input, shape index: {}]
  %s2 = inlined_call_operand.vmem [shape: f32[1,128], index: 2, kind: input, shape index: {}]
  %s3 = inlined_call_operand.vmem [shape: bf16[128,128], index: 3, kind: input, shape index: {}]
  %s4 = inlined_call_operand.vmem [shape: f32[1,128], index: 4, kind: input, shape index: {}]
  %s5 = inlined_call_operand.hbm [shape: f32[8,128], index: 5, kind: output, shape index: {}]
  %s6 = sld [smem:[#allocation0]]
  $region30: #{mlp_forward.1} parent=0
    _
  %s8 = ssub.s32 1, %s6
  %s9 = scalar_select 0, %s8, %s6
  $region1: #{mlp_forward.1} parent=0
    #allocation2 [shape = 'u8[4096]{0}', space=vmem, size = 0x1000, scoped, tag = 'output window, operand 0, single buffered']
    #allocation3 [shape = 's32[1]{0}', space=sflag, size = 0x4, scoped, tag = 'scoped memory for mlp_forward.1']
    %10 = vsyncpa [#allocation3], 0
    // Predicated region
    $region2: #{mlp_forward.1} parent=1 // pred_check
      _
    $region3: #{mlp_forward.1} parent=1 // pred_check_branch
      %12 = sbr.rel (0) target = $region5
    $region4: #{mlp_forward.1} parent=1 // pred_region
      _
    $region5: #{mlp_forward.1} parent=1 // pred_fallthru
      _
    // Predicated region
    $region6: #{mlp_forward.1} parent=1 // pred_check
      _
    $region7: #{mlp_forward.1} parent=1 // pred_check_branch
      %14 = sbr.rel (0) target = $region9
    $region8: #{mlp_forward.1} parent=1 // pred_region
      _
    $region9: #{mlp_forward.1} parent=1 // pred_fallthru
      _
    // Predicated region
    $region10: #{mlp_forward.1} parent=1 // pred_check
      _
    $region11: #{mlp_forward.1} parent=1 // pred_check_branch
      %16 = sbr.rel (0) target = $region13
    $region12: #{mlp_forward.1} parent=1 // pred_region
      _
    $region13: #{mlp_forward.1} parent=1 // pred_fallthru
      _
    // Predicated region
    $region14: #{mlp_forward.1} parent=1 // pred_check
      _
    $region15: #{mlp_forward.1} parent=1 // pred_check_branch
      %18 = sbr.rel (0) target = $region17
    $region16: #{mlp_forward.1} parent=1 // pred_region
      _
    $region17: #{mlp_forward.1} parent=1 // pred_fallthru
      _
    // Predicated region
    $region18: #{mlp_forward.1} parent=1 // pred_check
      _
    $region19: #{mlp_forward.1} parent=1 // pred_check_branch
      %20 = sbr.rel (0) target = $region21
    $region20: #{mlp_forward.1} parent=1 // pred_region
      _
    $region21: #{mlp_forward.1} parent=1 // pred_fallthru
      _
    %v21 = vld [vmem:[%s0] sm:$0xf]
    %v22 = vld [vmem:[%s1] sm:$0xf]
    %v23 = vld [vmem:[%s1 + $0x4] sm:$0xf]
    %v24 = vld [vmem:[%s1 + $0x8] sm:$0xf]
    %v25 = vld [vmem:[%s1 + $0xc] sm:$0xf]
    %v26 = vld [vmem:[%s1 + $0x10] sm:$0xf]
    %v27 = vld [vmem:[%s1 + $0x14] sm:$0xf]
    %v28 = vld [vmem:[%s1 + $0x18] sm:$0xf]
    %v29 = vld [vmem:[%s1 + $0x1c] sm:$0xf]
    %v30 = vld [vmem:[%s1 + $0x20] sm:$0xf]
    %v31 = vld [vmem:[%s1 + $0x24] sm:$0xf]
    %v32 = vld [vmem:[%s1 + $0x28] sm:$0xf]
    %v33 = vld [vmem:[%s1 + $0x2c] sm:$0xf]
    %v34 = vld [vmem:[%s1 + $0x30] sm:$0xf]
    %v35 = vld [vmem:[%s1 + $0x34] sm:$0xf]
    %v36 = vld [vmem:[%s1 + $0x38] sm:$0xf]
    %v37 = vld [vmem:[%s1 + $0x3c] sm:$0xf]
    %v38 = vld [vmem:[%s2] sm:$0x1]
    %v40 = vperm.slane %v38, 0
    %v58 = vunpack.c.l.b16 %v22
    %v59 = vunpack.c.l.b16 %v23
    %v60 = vunpack.c.l.b16 %v24
    %v61 = vunpack.c.l.b16 %v25
    %v62 = vunpack.c.l.b16 %v26
    %v63 = vunpack.c.l.b16 %v27
    %v64 = vunpack.c.l.b16 %v28
    %v65 = vunpack.c.l.b16 %v29
    %v66 = vunpack.c.l.b16 %v30
    %v67 = vunpack.c.l.b16 %v31
    %v68 = vunpack.c.l.b16 %v32
    %v69 = vunpack.c.l.b16 %v33
    %v70 = vunpack.c.l.b16 %v34
    %v71 = vunpack.c.l.b16 %v35
    %v72 = vunpack.c.l.b16 %v36
    %v73 = vunpack.c.l.b16 %v37
    %v74 = vpack.c.b16 %v59, %v58
    %v75 = vpack.c.b16 %v61, %v60
    %v76 = vpack.c.b16 %v63, %v62
    %v77 = vpack.c.b16 %v65, %v64
    %v78 = vpack.c.b16 %v67, %v66
    %v79 = vpack.c.b16 %v69, %v68
    %v80 = vpack.c.b16 %v71, %v70
    %v81 = vpack.c.b16 %v73, %v72
    %90 = vmatpush.bf16.msra.mxu0 %v81
    %91 = vmatpush.bf16.msra.mxu0 %v80
    %92 = vmatpush.bf16.msra.mxu0 %v79
    %93 = vmatpush.bf16.msra.mxu0 %v78
    %94 = vmatpush.bf16.msra.mxu0 %v77
    %95 = vmatpush.bf16.msra.mxu0 %v76
    %96 = vmatpush.bf16.msra.mxu0 %v75
    %97 = vmatpush.bf16.msra.mxu0 %v74
    %98 = vmatmul.bf16.gmra.mxu0 %v21
    %v99 = vpop.f32.mrf.mxu0
    %v100 = vadd.f32 %v40, %v99
    %v101 = vpop.f32.mrf.mxu0
    %102 = vdwg.mxu0
    %v103 = vmax.f32 %v100, 0.0
    %v104 = vpack.c.bf16 %v103, %v103
    %v105 = vld [vmem:[%s3] sm:$0xf]
    %v106 = vld [vmem:[%s3 + $0x4] sm:$0xf]
    %v107 = vld [vmem:[%s3 + $0x8] sm:$0xf]
    %v108 = vld [vmem:[%s3 + $0xc] sm:$0xf]
    %v109 = vld [vmem:[%s3 + $0x10] sm:$0xf]
    %v110 = vld [vmem:[%s3 + $0x14] sm:$0xf]
    %v111 = vld [vmem:[%s3 + $0x18] sm:$0xf]
    %v112 = vld [vmem:[%s3 + $0x1c] sm:$0xf]
    %v113 = vld [vmem:[%s3 + $0x20] sm:$0xf]
    %v114 = vld [vmem:[%s3 + $0x24] sm:$0xf]
    %v115 = vld [vmem:[%s3 + $0x28] sm:$0xf]
    %v116 = vld [vmem:[%s3 + $0x2c] sm:$0xf]
    %v117 = vld [vmem:[%s3 + $0x30] sm:$0xf]
    %v118 = vld [vmem:[%s3 + $0x34] sm:$0xf]
    %v119 = vld [vmem:[%s3 + $0x38] sm:$0xf]
    %v120 = vld [vmem:[%s3 + $0x3c] sm:$0xf]
    %v121 = vld [vmem:[%s4] sm:$0x1]
    %v123 = vperm.slane %v121, 0
    %v141 = vunpack.c.l.b16 %v105
    %v142 = vunpack.c.l.b16 %v106
    %v143 = vunpack.c.l.b16 %v107
    %v144 = vunpack.c.l.b16 %v108
    %v145 = vunpack.c.l.b16 %v109
    %v146 = vunpack.c.l.b16 %v110
    %v147 = vunpack.c.l.b16 %v111
    %v148 = vunpack.c.l.b16 %v112
    %v149 = vunpack.c.l.b16 %v113
    %v150 = vunpack.c.l.b16 %v114
    %v151 = vunpack.c.l.b16 %v115
    %v152 = vunpack.c.l.b16 %v116
    %v153 = vunpack.c.l.b16 %v117
    %v154 = vunpack.c.l.b16 %v118
    %v155 = vunpack.c.l.b16 %v119
    %v156 = vunpack.c.l.b16 %v120
    %v157 = vpack.c.b16 %v142, %v141
    %v158 = vpack.c.b16 %v144, %v143
    %v159 = vpack.c.b16 %v146, %v145
    %v160 = vpack.c.b16 %v148, %v147
    %v161 = vpack.c.b16 %v150, %v149
    %v162 = vpack.c.b16 %v152, %v151
    %v163 = vpack.c.b16 %v154, %v153
    %v164 = vpack.c.b16 %v156, %v155
    %173 = vmatpush.bf16.msra.mxu0 %v164
    %174 = vmatpush.bf16.msra.mxu0 %v163
    %175 = vmatpush.bf16.msra.mxu0 %v162
    %176 = vmatpush.bf16.msra.mxu0 %v161
    %177 = vmatpush.bf16.msra.mxu0 %v160
    %178 = vmatpush.bf16.msra.mxu0 %v159
    %179 = vmatpush.bf16.msra.mxu0 %v158
    %180 = vmatpush.bf16.msra.mxu0 %v157
    %181 = vmatmul.bf16.gmra.mxu0 %v104
    %v182 = vpop.f32.mrf.mxu0
    %v183 = vadd.f32 %v123, %v182
    %v184 = vpop.f32.mrf.mxu0
    %185 = vdwg.mxu0
    %v186 = vlaneseq
    %v187 = vand.u32 %v186, 127
    %vm188 = vcmp.lt.s32.totalorder %v187, 16
    %v189 = vsel %vm188, %v183, -1e+30
    %190 = vmax.xlane.f32.xlu0 %v189
    %v191 = vpop.xlane.xlu0 %190
    %v192 = vsub.f32 %v189, %v191
    %v193 = vmul.f32 %v192, 1.442695
    %v194 = vpow.pop %v193
    %195 = vadd.xlane.f32.xlu0 %v194
    %v196 = vpop.xlane.xlu0 %195
    %v197 = vrcp.pop %v196
    %v198 = vmul.f32 %v194, %v197
    %199 = vst [vmem:[#allocation2] sm:$0xff] %v198
    // Predicated region
    $region22: #{mlp_forward.1} parent=1 // pred_check
      _
    $region23: #{mlp_forward.1} parent=1 // pred_check_branch
      %201 = sbr.rel (0) target = $region25
    $region24: #{mlp_forward.1} parent=1 // pred_region
      %203 = vsyncadd [#allocation3], 0
      %s205 = sshll.u32 [#allocation2], 4
      %s206 = int_to_ptr.vmem [resolvable:$true] %s205
      %s207 = sshll.u32 %s5, 4
      %s208 = int_to_ptr.hbm [resolvable:$true] %s207
      %210 = dma.vmem_to_hbm [thread:$0]  %s206, 128, %s208, [#allocation3]
    $region25: #{mlp_forward.1} parent=1 // pred_fallthru
      _
    // Predicated region
    $region26: #{mlp_forward.1} parent=1 // pred_check
      _
    $region27: #{mlp_forward.1} parent=1 // pred_check_branch
      %212 = sbr.rel (0) target = $region29
    $region28: #{mlp_forward.1} parent=1 // pred_region
      %214 = dma.done [#allocation3], 128
    $region29: #{mlp_forward.1} parent=1 // pred_fallthru
      _
    %215 = vsyncpa [#allocation3], 1

</llo_original>
